<compile_context>
chip_gen: v5e
topology: v5e:2x2
jax: 0.10.0
libtpu: 0.0.40
codegen_flags: <defaults>
</compile_context>

<pallas_src>
import jax
import jax.numpy as jnp
from jax.experimental import pallas as pl
from jax.experimental.pallas import tpu as pltpu

_CHUNK = 512          # lanes per inner step: a [1, 512] f32 slab is 4 vregs
_TB_MAX = 32768       # max lane-tile per grid step (~4 MiB double-buffered VMEM)
_XLA_BATCH_CUTOFF = 4096


def _round_up(n, m):
    return (n + m - 1) // m * m


def fused_linear_kernel(xT_ref, w_ref, b_ref, oT_ref):
    # xT_ref: [K, TB] VMEM (batch on lanes); w_ref: [K, N] SMEM; b_ref: [N] SMEM;
    # oT_ref: [N, TB] VMEM.
    k_dim = xT_ref.shape[0]          # 5
    n_dim = oT_ref.shape[0]          # 2
    tb = oT_ref.shape[1]             # lane-tile size, multiple of _CHUNK
    n_chunks = tb // _CHUNK

    # Hoisted SMEM scalar reads (12 floats total) - read once per grid step.
    w = [[w_ref[k, n] for n in range(n_dim)] for k in range(k_dim)]
    b = [b_ref[n] for n in range(n_dim)]

    def body(c, carry):
        j = pl.multiple_of(c * _CHUNK, _CHUNK)
        cols = pl.ds(j, _CHUNK)
        # Per-output-channel accumulators, initialized with the fused bias.
        accs = [jnp.full((1, _CHUNK), b[n], dtype=jnp.float32) for n in range(n_dim)]
        # Static unroll over the tiny contraction dim; per-k slices are read
        # straight from the VMEM ref (nothing larger than [1, _CHUNK] lives in vregs).
        for k in range(k_dim):
            xk = xT_ref[k:k + 1, cols].astype(jnp.float32)      # [1, _CHUNK], lane-dense
            for n in range(n_dim):
                accs[n] = accs[n] + xk * w[k][n]                # scalar x full-lane vreg (VPU)
        for n in range(n_dim):
            oT_ref[n:n + 1, cols] = accs[n].astype(oT_ref.dtype)
        return carry

    jax.lax.fori_loop(0, n_chunks, body, 0)


def mymodel_forward(x, w1, b1, w2, b2, *, use_pallas=None):
    """x: [B, 5]; w1: [5, 10]; b1: [10]; w2: [10, 2]; b2: [2] (W in [in, out] layout)."""
    # Exact layer fusion (no nonlinearity between fc1 and fc2):
    #   (x @ w1 + b1) @ w2 + b2 == x @ (w1 @ w2) + (b1 @ w2 + b2)
    w_eff = jnp.dot(w1, w2, preferred_element_type=jnp.float32)          # [5, 2]
    b_eff = jnp.dot(b1, w2, preferred_element_type=jnp.float32) + b2     # [2]

    B = x.shape[0]
    K, N = w_eff.shape

    if use_pallas is None:
        use_pallas = B >= _XLA_BATCH_CUTOFF
    if not use_pallas:
        # At small B the pallas_call launch + per-step overhead exceeds the
        # total memory traffic of the op; let XLA's fused tiny matmul win.
        return (jnp.dot(x, w_eff, preferred_element_type=jnp.float32) + b_eff).astype(x.dtype)

    # Lane-dense layout: batch on the 128-lane axis (kernel computes out^T from x^T).
    B_pad = _round_up(B, _CHUNK)
    # Lane tile: as large as sensible, split ~in half so v7x's two TensorCores
    # both get work; always a multiple of _CHUNK (and hence of 128).
    TB = min(_TB_MAX, max(_CHUNK, _round_up(-(-B_pad // 2), _CHUNK)))
    B_pad = _round_up(B_pad, TB)                 # all grid blocks full, no partial-block reliance
    grid = (B_pad // TB,)

    xT = jnp.pad(x, ((0, B_pad - B), (0, 0))).T  # [K, B_pad]  (wrapper-side layout plumbing)

    outT = pl.pallas_call(
        fused_linear_kernel,
        out_shape=jax.ShapeDtypeStruct((N, B_pad), x.dtype),
        grid=grid,
        in_specs=[
            pl.BlockSpec((K, TB), lambda i: (0, i)),               # x^T lane tile per grid step
            pl.BlockSpec(memory_space=pltpu.MemorySpace.SMEM),     # fused weight (12 floats)
            pl.BlockSpec(memory_space=pltpu.MemorySpace.SMEM),     # fused bias
        ],
        out_specs=pl.BlockSpec((N, TB), lambda i: (0, i)),
        compiler_params=pltpu.CompilerParams(
            # Batch tiles are independent -> shard across TensorCores (v7x megacore).
            dimension_semantics=("parallel",),
        ),
    )(xT, w_eff, b_eff)

    return outT[:, :B].T


def init_params(key):
    # Deterministic init mimicking nn.Linear's uniform(-1/sqrt(fan_in), 1/sqrt(fan_in)).
    k1, k2, k3, k4 = jax.random.split(key, 4)
    bound1 = 1.0 / jnp.sqrt(5.0)
    bound2 = 1.0 / jnp.sqrt(10.0)
    w1 = jax.random.uniform(k1, (5, 10), jnp.float32, -bound1, bound1)
    b1 = jax.random.uniform(k2, (10,), jnp.float32, -bound1, bound1)
    w2 = jax.random.uniform(k3, (10, 2), jnp.float32, -bound2, bound2)
    b2 = jax.random.uniform(k4, (2,), jnp.float32, -bound2, bound2)
    return w1, b1, w2, b2


if __name__ == "__main__":
    key = jax.random.PRNGKey(0)
    kx, kp = jax.random.split(key)
    w1, b1, w2, b2 = init_params(kp)

    # Small shape consistent with the module (batch=8, in_features=5), forced
    # through the Pallas path so the kernel itself is exercised.
    x = jax.random.normal(kx, (8, 5), jnp.float32)
    out = jax.block_until_ready(mymodel_forward(x, w1, b1, w2, b2, use_pallas=True))
    ref = (x @ w1 + b1) @ w2 + b2
    assert out.shape == (8, 2)
    assert jnp.allclose(out, ref, atol=1e-5, rtol=1e-5)

    # A batch that is not a multiple of the tile/chunk, exercising the
    # multi-block grid and the in-kernel chunk loop.
    x2 = jax.random.normal(kx, (3000, 5), jnp.float32)
    out2 = jax.block_until_ready(mymodel_forward(x2, w1, b1, w2, b2, use_pallas=True))
    ref2 = (x2 @ w1 + b1) @ w2 + b2
    assert out2.shape == (3000, 2)
    assert jnp.allclose(out2, ref2, atol=1e-5, rtol=1e-5)

    print("KERNEL_OK")
</pallas_src>

<mosaic_0001>
module attributes {stable_mosaic.version = 11 : i64} {
  func.func @fused_linear_kernel(%arg0: i32, %arg1: memref<5x512xf32, #tpu.memory_space<vmem>>, %arg2: memref<5x2xf32, #tpu.memory_space<smem>>, %arg3: memref<2xf32, #tpu.memory_space<smem>>, %arg4: memref<2x512xf32, #tpu.memory_space<vmem>>) attributes {dimension_semantics = [#tpu.dimension_semantics<parallel>], iteration_bounds = array<i64: 1>, scalar_prefetch = 0 : i64, scratch_operands = 0 : i64, tpu.core_type = #tpu.core_type<tc>, window_params = [{transform_indices = @transform_0, window_bounds = array<i64: 5, 512>}, {transform_indices = @transform_1, window_bounds = array<i64: 5, 2>}, {transform_indices = @transform_2, window_bounds = array<i64: 2>}, {transform_indices = @transform_3, window_bounds = array<i64: 2, 512>}]} {
    %c0 = arith.constant 0 : index
    %c0_0 = arith.constant 0 : index
    %0 = memref.load %arg2[%c0, %c0_0] : memref<5x2xf32, #tpu.memory_space<smem>>
    %c0_1 = arith.constant 0 : index
    %c1 = arith.constant 1 : index
    %1 = memref.load %arg2[%c0_1, %c1] : memref<5x2xf32, #tpu.memory_space<smem>>
    %c1_2 = arith.constant 1 : index
    %c0_3 = arith.constant 0 : index
    %2 = memref.load %arg2[%c1_2, %c0_3] : memref<5x2xf32, #tpu.memory_space<smem>>
    %c1_4 = arith.constant 1 : index
    %c1_5 = arith.constant 1 : index
    %3 = memref.load %arg2[%c1_4, %c1_5] : memref<5x2xf32, #tpu.memory_space<smem>>
    %c2 = arith.constant 2 : index
    %c0_6 = arith.constant 0 : index
    %4 = memref.load %arg2[%c2, %c0_6] : memref<5x2xf32, #tpu.memory_space<smem>>
    %c2_7 = arith.constant 2 : index
    %c1_8 = arith.constant 1 : index
    %5 = memref.load %arg2[%c2_7, %c1_8] : memref<5x2xf32, #tpu.memory_space<smem>>
    %c3 = arith.constant 3 : index
    %c0_9 = arith.constant 0 : index
    %6 = memref.load %arg2[%c3, %c0_9] : memref<5x2xf32, #tpu.memory_space<smem>>
    %c3_10 = arith.constant 3 : index
    %c1_11 = arith.constant 1 : index
    %7 = memref.load %arg2[%c3_10, %c1_11] : memref<5x2xf32, #tpu.memory_space<smem>>
    %c4 = arith.constant 4 : index
    %c0_12 = arith.constant 0 : index
    %8 = memref.load %arg2[%c4, %c0_12] : memref<5x2xf32, #tpu.memory_space<smem>>
    %c4_13 = arith.constant 4 : index
    %c1_14 = arith.constant 1 : index
    %9 = memref.load %arg2[%c4_13, %c1_14] : memref<5x2xf32, #tpu.memory_space<smem>>
    %c0_15 = arith.constant 0 : index
    %10 = memref.load %arg3[%c0_15] : memref<2xf32, #tpu.memory_space<smem>>
    %c1_16 = arith.constant 1 : index
    %11 = memref.load %arg3[%c1_16] : memref<2xf32, #tpu.memory_space<smem>>
    %c0_i32 = arith.constant 0 : i32
    %c512_i32 = arith.constant 512 : i32
    %12 = arith.muli %c0_i32, %c512_i32 : i32
    %13 = tpu.assume_multiple %12, 512 : i32
    %14 = vector.broadcast %10 : f32 to vector<1x512xf32>
    %15 = vector.broadcast %11 : f32 to vector<1x512xf32>
    %c0_17 = arith.constant 0 : index
    %16 = arith.index_cast %13 : i32 to index
    %17 = vector.load %arg1[%c0_17, %16] : memref<5x512xf32, #tpu.memory_space<vmem>>, vector<1x512xf32>
    %18 = vector.broadcast %0 : f32 to vector<1x512xf32>
    %19 = arith.mulf %17, %18 : vector<1x512xf32>
    %20 = arith.addf %14, %19 : vector<1x512xf32>
    %21 = vector.broadcast %1 : f32 to vector<1x512xf32>
    %22 = arith.mulf %17, %21 : vector<1x512xf32>
    %23 = arith.addf %15, %22 : vector<1x512xf32>
    %c1_18 = arith.constant 1 : index
    %24 = arith.index_cast %13 : i32 to index
    %25 = vector.load %arg1[%c1_18, %24] : memref<5x512xf32, #tpu.memory_space<vmem>>, vector<1x512xf32>
    %26 = vector.broadcast %2 : f32 to vector<1x512xf32>
    %27 = arith.mulf %25, %26 : vector<1x512xf32>
    %28 = arith.addf %20, %27 : vector<1x512xf32>
    %29 = vector.broadcast %3 : f32 to vector<1x512xf32>
    %30 = arith.mulf %25, %29 : vector<1x512xf32>
    %31 = arith.addf %23, %30 : vector<1x512xf32>
    %c2_19 = arith.constant 2 : index
    %32 = arith.index_cast %13 : i32 to index
    %33 = vector.load %arg1[%c2_19, %32] : memref<5x512xf32, #tpu.memory_space<vmem>>, vector<1x512xf32>
    %34 = vector.broadcast %4 : f32 to vector<1x512xf32>
    %35 = arith.mulf %33, %34 : vector<1x512xf32>
    %36 = arith.addf %28, %35 : vector<1x512xf32>
    %37 = vector.broadcast %5 : f32 to vector<1x512xf32>
    %38 = arith.mulf %33, %37 : vector<1x512xf32>
    %39 = arith.addf %31, %38 : vector<1x512xf32>
    %c3_20 = arith.constant 3 : index
    %40 = arith.index_cast %13 : i32 to index
    %41 = vector.load %arg1[%c3_20, %40] : memref<5x512xf32, #tpu.memory_space<vmem>>, vector<1x512xf32>
    %42 = vector.broadcast %6 : f32 to vector<1x512xf32>
    %43 = arith.mulf %41, %42 : vector<1x512xf32>
    %44 = arith.addf %36, %43 : vector<1x512xf32>
    %45 = vector.broadcast %7 : f32 to vector<1x512xf32>
    %46 = arith.mulf %41, %45 : vector<1x512xf32>
    %47 = arith.addf %39, %46 : vector<1x512xf32>
    %c4_21 = arith.constant 4 : index
    %48 = arith.index_cast %13 : i32 to index
    %49 = vector.load %arg1[%c4_21, %48] : memref<5x512xf32, #tpu.memory_space<vmem>>, vector<1x512xf32>
    %50 = vector.broadcast %8 : f32 to vector<1x512xf32>
    %51 = arith.mulf %49, %50 : vector<1x512xf32>
    %52 = arith.addf %44, %51 : vector<1x512xf32>
    %53 = vector.broadcast %9 : f32 to vector<1x512xf32>
    %54 = arith.mulf %49, %53 : vector<1x512xf32>
    %55 = arith.addf %47, %54 : vector<1x512xf32>
    %c0_22 = arith.constant 0 : index
    %56 = arith.index_cast %13 : i32 to index
    %57 = vector.load %arg4[%c0_22, %56] : memref<2x512xf32, #tpu.memory_space<vmem>>, vector<1x512xf32>
    tpu.vector_store %arg4[%c0_22, %56], %52 {strides = array<i32>} : memref<2x512xf32, #tpu.memory_space<vmem>>, vector<1x512xf32>,
    %c1_23 = arith.constant 1 : index
    %58 = arith.index_cast %13 : i32 to index
    %59 = vector.load %arg4[%c1_23, %58] : memref<2x512xf32, #tpu.memory_space<vmem>>, vector<1x512xf32>
    tpu.vector_store %arg4[%c1_23, %58], %55 {strides = array<i32>} : memref<2x512xf32, #tpu.memory_space<vmem>>, vector<1x512xf32>,
    %c1_i32 = arith.constant 1 : i32
    return
  }
  func.func @transform_0(%arg0: i32) -> (i32, i32) {
    %c0_i32 = arith.constant 0 : i32
    %c0_i32_0 = arith.constant 0 : i32
    return %c0_i32, %arg0 : i32, i32
  }
  func.func @transform_1(%arg0: i32) -> (i32, i32) {
    %c0_i32 = arith.constant 0 : i32
    %c0_i32_0 = arith.constant 0 : i32
    %c0_i32_1 = arith.constant 0 : i32
    return %c0_i32, %c0_i32_0 : i32, i32
  }
  func.func @transform_2(%arg0: i32) -> i32 {
    %c0_i32 = arith.constant 0 : i32
    %c0_i32_0 = arith.constant 0 : i32
    return %c0_i32 : i32
  }
  func.func @transform_3(%arg0: i32) -> (i32, i32) {
    %c0_i32 = arith.constant 0 : i32
    %c0_i32_0 = arith.constant 0 : i32
    return %c0_i32, %arg0 : i32, i32
  }
}

</mosaic_0001>

<llo_original>
// kernel: tpu_custom_call.1
$region0: #{tpu_custom_call.1}
  #allocation0 [shape = 'u32[]', space=smem, size = 0x4, offset = 0x4, fixed_abs, tag = 'smem constant byte address 0x4 - core index']
  #allocation1 [shape = 'u32[72,128]{1,0:T(1,128)}', space=vmem, size = 0x9000, scoped, tag = 'internal scratch']
  %s0 = inlined_call_operand.hbm [shape: f32[5,512], index: 0, kind: input, shape index: {}]
  %s1 = inlined_call_operand.vmem [shape: f32[5,2], index: 1, kind: input, shape index: {}]
  %s2 = inlined_call_operand.vmem [shape: f32[2], index: 2, kind: input, shape index: {}]
  %s3 = inlined_call_operand.hbm [shape: f32[2,512], index: 3, kind: output, shape index: {}]
  %s4 = sld [smem:[#allocation0]]
  $region34: #{tpu_custom_call.1} parent=0
    _
  %s6 = ssub.s32 1, %s4
  %s7 = scalar_select 0, %s6, %s4
  $region1: #{tpu_custom_call.1} parent=0
    #allocation2 [shape = 'u8[16384]{0}', space=vmem, size = 0x4000, scoped, tag = 'input window, operand 0, single buffered']
    #allocation3 [shape = 's32[1]{0}', space=sflag, size = 0x4, scoped, tag = 'scoped memory for tpu_custom_call.1']
    #allocation4 [shape = 's32[1]{0}', space=sflag, size = 0x4, scoped, tag = 'scoped memory for tpu_custom_call.1']
    #allocation5 [shape = 's32[1]{0}', space=sflag, size = 0x4, scoped, tag = 'scoped memory for tpu_custom_call.1']
    #allocation6 [shape = 'u8[4096]{0}', space=smem, size = 0x1000, scoped, tag = 'input window, operand 1, single buffered']
    #allocation7 [shape = 'u8[512]{0}', space=smem, size = 0x200, scoped, tag = 'input window, operand 2, single buffered']
    #allocation8 [shape = 's32[1]{0}', space=sflag, size = 0x4, scoped, tag = 'scoped memory for tpu_custom_call.1']
    #allocation9 [shape = 'u8[4096]{0}', space=vmem, size = 0x1000, scoped, tag = 'output window, operand 0, single buffered']
    %8 = vsyncpa [#allocation3], 0
    %9 = vsyncpa [#allocation5], 0
    %10 = vsyncpa [#allocation8], 0
    %11 = vsyncpa [#allocation4], 0
    // Predicated region
    $region2: #{tpu_custom_call.1} parent=1 // pred_check
      _
    $region3: #{tpu_custom_call.1} parent=1 // pred_check_branch
      %13 = sbr.rel (0) target = $region5
    $region4: #{tpu_custom_call.1} parent=1 // pred_region
      %15 = vsyncadd [#allocation3], 0
      %s17 = sshll.u32 %s0, 4
      %s18 = int_to_ptr.hbm [resolvable:$true] %s17
      %s19 = sshll.u32 [#allocation2], 4
      %s20 = int_to_ptr.vmem [resolvable:$true] %s19
      %22 = dma.hbm_to_vmem [thread:$0]  %s18, 512, %s20, [#allocation3]
    $region5: #{tpu_custom_call.1} parent=1 // pred_fallthru
      _
    // Predicated region
    $region6: #{tpu_custom_call.1} parent=1 // pred_check
      _
    $region7: #{tpu_custom_call.1} parent=1 // pred_check_branch
      %24 = sbr.rel (0) target = $region9
    $region8: #{tpu_custom_call.1} parent=1 // pred_region
      %26 = vsyncadd [#allocation5], 0
      %s28 = sshll.u32 %s1, 4
      %s29 = int_to_ptr.vmem [resolvable:$true] %s28
      %31 = dma.vmem_to_smem %s29, 128, [#allocation6], [#allocation5]
    $region9: #{tpu_custom_call.1} parent=1 // pred_fallthru
      _
    // Predicated region
    $region10: #{tpu_custom_call.1} parent=1 // pred_check
      _
    $region11: #{tpu_custom_call.1} parent=1 // pred_check_branch
      %33 = sbr.rel (0) target = $region13
    $region12: #{tpu_custom_call.1} parent=1 // pred_region
      %35 = vsyncadd [#allocation8], 0
      %s37 = sshll.u32 %s2, 4
      %s38 = int_to_ptr.vmem [resolvable:$true] %s37
      %40 = dma.vmem_to_smem %s38, 16, [#allocation7], [#allocation8]
    $region13: #{tpu_custom_call.1} parent=1 // pred_fallthru
      _
    // Predicated region
    $region14: #{tpu_custom_call.1} parent=1 // pred_check
      _
    $region15: #{tpu_custom_call.1} parent=1 // pred_check_branch
      %42 = sbr.rel (0) target = $region17
    $region16: #{tpu_custom_call.1} parent=1 // pred_region
      %44 = dma.done [#allocation3], 512
    $region17: #{tpu_custom_call.1} parent=1 // pred_fallthru
      _
    // Predicated region
    $region18: #{tpu_custom_call.1} parent=1 // pred_check
      _
    $region19: #{tpu_custom_call.1} parent=1 // pred_check_branch
      %46 = sbr.rel (0) target = $region21
    $region20: #{tpu_custom_call.1} parent=1 // pred_region
      %48 = dma.done [#allocation5], 128
    $region21: #{tpu_custom_call.1} parent=1 // pred_fallthru
      _
    // Predicated region
    $region22: #{tpu_custom_call.1} parent=1 // pred_check
      _
    $region23: #{tpu_custom_call.1} parent=1 // pred_check_branch
      %50 = sbr.rel (0) target = $region25
    $region24: #{tpu_custom_call.1} parent=1 // pred_region
      %52 = dma.done [#allocation8], 16
    $region25: #{tpu_custom_call.1} parent=1 // pred_fallthru
      _
    %53 = sfence
    %s54 = sld [smem:[#allocation6]]
    %s55 = sld [smem:[#allocation6 + $0x1]]
    %s56 = sld [smem:[#allocation6 + $0x80]]
    %s57 = sld [smem:[#allocation6 + $0x81]]
    %s58 = sld [smem:[#allocation6 + $0x100]]
    %s59 = sld [smem:[#allocation6 + $0x101]]
    %s60 = sld [smem:[#allocation6 + $0x180]]
    %s61 = sld [smem:[#allocation6 + $0x181]]
    %s62 = sld [smem:[#allocation6 + $0x200]]
    %s63 = sld [smem:[#allocation6 + $0x201]]
    %s64 = sld [smem:[#allocation7]]
    %s65 = sld [smem:[#allocation7 + $0x1]]
    %v66 = vstv %s64
    %v67 = vstv %s65
    %v68 = vld [vmem:[#allocation2] ss:$8 sm:$0xf]
    %v69 = vstv %s54
    %v70 = vmul.f32 %v68, %v69
    %v71 = vadd.f32 %v66, %v70
    %v72 = vstv %s55
    %v73 = vmul.f32 %v68, %v72
    %v74 = vadd.f32 %v67, %v73
    %s75 = scalar_lea.vmem [#allocation2], 1
    %v76 = vld [vmem:[%s75] ss:$8 sm:$0xf]
    %v77 = vstv %s56
    %v78 = vmul.f32 %v76, %v77
    %v79 = vadd.f32 %v71, %v78
    %v80 = vstv %s57
    %v81 = vmul.f32 %v76, %v80
    %v82 = vadd.f32 %v74, %v81
    %s83 = scalar_lea.vmem [#allocation2], 2
    %v84 = vld [vmem:[%s83] ss:$8 sm:$0xf]
    %v85 = vstv %s58
    %v86 = vmul.f32 %v84, %v85
    %v87 = vadd.f32 %v79, %v86
    %v88 = vstv %s59
    %v89 = vmul.f32 %v84, %v88
    %v90 = vadd.f32 %v82, %v89
    %s91 = scalar_lea.vmem [#allocation2], 3
    %v92 = vld [vmem:[%s91] ss:$8 sm:$0xf]
    %v93 = vstv %s60
    %v94 = vmul.f32 %v92, %v93
    %v95 = vadd.f32 %v87, %v94
    %v96 = vstv %s61
    %v97 = vmul.f32 %v92, %v96
    %v98 = vadd.f32 %v90, %v97
    %s99 = scalar_lea.vmem [#allocation2], 4
    %v100 = vld [vmem:[%s99] ss:$8 sm:$0xf]
    %v101 = vstv %s62
    %v102 = vmul.f32 %v100, %v101
    %v103 = vadd.f32 %v95, %v102
    %v104 = vstv %s63
    %v105 = vmul.f32 %v100, %v104
    %v106 = vadd.f32 %v98, %v105
    %v107 = vlaneseq
    %vm108 = vcmp.ge.s32.totalorder %v107, 0
    %vm109 = vcmp.lt.s32.totalorder %v107, 512
    %vm110 = vmand %vm108, %vm109
    %111 = vst.msk [vmem:[#allocation9] ss:$2 sm:$0xf] %vm110, %v103
    %s112 = scalar_lea.vmem [#allocation9], 1
    %113 = vst.msk [vmem:[%s112] ss:$2 sm:$0xf] %vm110, %v106
    // Predicated region
    $region26: #{tpu_custom_call.1} parent=1 // pred_check
      _
    $region27: #{tpu_custom_call.1} parent=1 // pred_check_branch
      %115 = sbr.rel (0) target = $region29
    $region28: #{tpu_custom_call.1} parent=1 // pred_region
      %117 = vsyncadd [#allocation4], 0
      %s119 = sshll.u32 [#allocation9], 4
      %s120 = int_to_ptr.vmem [resolvable:$true] %s119
      %s121 = sshll.u32 %s3, 4
      %s122 = int_to_ptr.hbm [resolvable:$true] %s121
      %124 = dma.vmem_to_hbm [thread:$0]  %s120, 128, %s122, [#allocation4]
    $region29: #{tpu_custom_call.1} parent=1 // pred_fallthru
      _
    // Predicated region
    $region30: #{tpu_custom_call.1} parent=1 // pred_check
      _
    $region31: #{tpu_custom_call.1} parent=1 // pred_check_branch
      %126 = sbr.rel (0) target = $region33
    $region32: #{tpu_custom_call.1} parent=1 // pred_region
      %128 = dma.done [#allocation4], 128
    $region33: #{tpu_custom_call.1} parent=1 // pred_fallthru
      _
    %129 = vsyncpa [#allocation3], 1
    %130 = vsyncpa [#allocation4], 1
    %131 = vsyncpa [#allocation5], 1
    %132 = vsyncpa [#allocation8], 1

</llo_original>
